<compile_context>
chip_gen: v5e
topology: v5e:2x2
jax: 0.10.0
libtpu: 0.0.40
codegen_flags: <defaults>
</compile_context>

<pallas_src>
import numpy as np

import jax
import jax.numpy as jnp
from jax.experimental import pallas as pl
from jax.experimental.pallas import tpu as pltpu

_HIGHEST = jax.lax.Precision.HIGHEST


# --------------------------------------------------------------------------- #
# Fused decoder kernel: one grid step == one block of TB batch elements.
# --------------------------------------------------------------------------- #
def _wrench_decoder_kernel(x_ref, wt_ref, scat_ref, const_ref, o_ref):
    """x_ref: (TB, z_dim, L); wt_ref: (wd, z_dim); scat_ref: (L, L_out);
    const_ref: (wd, L_out); o_ref: (TB, wd, L_out)."""
    tb = x_ref.shape[0]
    wt = wt_ref[...]          # hoisted: invariant operands loaded once per step
    scat = scat_ref[...]
    const = const_ref[...]
    # Trace-time-unrolled loop over the TB batch elements resident in this grid
    # step (TB is small; every matmul is 2-D => guaranteed Mosaic lowering).
    for b in range(tb):
        # Composed 5-layer matmul for the data-carrying positions (mult. of 32).
        m = jnp.dot(wt, x_ref[b], preferred_element_type=jnp.float32,
                    precision=_HIGHEST)                              # (wd, L)
        # Stride-32 scatter into the lane-dense output via a one-hot matmul
        # (MXU; avoids in-kernel reshape/gather).
        y = jnp.dot(m, scat, preferred_element_type=jnp.float32,
                    precision=_HIGHEST)                              # (wd, L_out)
        # Bias-only positions + composed bias, then the final tanh.
        o_ref[b] = jnp.tanh(y + const).astype(o_ref.dtype)


# --------------------------------------------------------------------------- #
# Trace-time folding of the 5 ConvTranspose1d(k=1, s=2) layers.
# --------------------------------------------------------------------------- #
def fold_wrench_decoder_params(params):
    """params: list of (W (c_in, c_out), b (c_out,)) in layer order.

    Returns:
      w_comp: (z_dim, wrench_dim) = W1 @ W2 @ ... @ Wn
      levels: list of n vectors; levels[j] is the constant pre-tanh output of a
              position with trailing-zero count j (clamped to n-1); levels[n-1]
              is also the composed bias of data-carrying positions.
    """
    ws = [w.astype(jnp.float32) for w, _ in params]
    bs = [b.astype(jnp.float32) for _, b in params]
    n = len(params)
    levels = [bs[-1]]              # odd positions: last layer's bias only
    suffix = ws[-1]                # W_n
    for k in range(n - 2, -1, -1):
        levels.append(jnp.dot(bs[k], suffix, precision=_HIGHEST) + levels[-1])
        suffix = jnp.dot(ws[k], suffix, precision=_HIGHEST)
    return suffix, levels


def _pick_batch_block(n_batch, bytes_per_elt):
    """Largest TB <= 8 dividing n_batch that targets ~0.5 MB/step and keeps
    the grid length >= 2 (so v7x can shard steps across both TensorCores)."""
    tb = max(1, min(8, (512 * 1024) // max(bytes_per_elt, 1)))
    if n_batch >= 2:
        tb = max(1, min(tb, n_batch // 2))
    tb = min(tb, n_batch)
    while n_batch % tb:
        tb -= 1
    return tb


def wrench_decoder_forward(wrench_feature_ncl, params, *, batch_block=None):
    """(N, z_dim, L) NCL -> (N, wrench_dim, 2^n*L - (2^n - 1)) NCL, like PyTorch."""
    n_batch, z_dim, length = wrench_feature_ncl.shape
    n_layers = len(params)
    stride_tot = 2 ** n_layers
    l_out = stride_tot * length - (stride_tot - 1)
    wrench_dim = params[-1][1].shape[0]
    dtype = wrench_feature_ncl.dtype
    elt = jnp.dtype(dtype).itemsize

    w_comp, levels = fold_wrench_decoder_params(params)
    wt = w_comp.T.astype(dtype)                                   # (wd, z_dim)

    # Constant (bias-only) value for every output position, keyed by trailing
    # zeros of the position index (clamped: >= n-1 means "data-position bias").
    # Kept full-width (wd, L_out): it is DMA'd once (constant index_map) and an
    # in-kernel 32-periodic tile would cost a lane relayout.
    tz = np.empty((l_out,), np.int32)
    for p in range(l_out):
        tz[p] = n_layers - 1 if p == 0 else min((p & -p).bit_length() - 1,
                                                n_layers - 1)
    const_tbl = jnp.stack(levels, axis=0)[jnp.asarray(tz)].T.astype(dtype)  # (wd, L_out)

    # One-hot scatter matrix: intermediate column l -> output position 32*l.
    # TODO(synk): O(L^2) VMEM; for very long L replace with a per-residue
    #   construction or chunk L_out over a second grid axis (v7x: 64 MiB VMEM).
    scat = np.zeros((length, l_out), np.float32)
    scat[np.arange(length), stride_tot * np.arange(length)] = 1.0
    scat = jnp.asarray(scat, dtype)

    # ---- batch blocking -----------------------------------------------------
    bytes_per_elt = (z_dim * length + wrench_dim * l_out) * elt
    tb = batch_block if batch_block is not None else _pick_batch_block(
        n_batch, bytes_per_elt)
    grid = (n_batch // tb,)

    # ---- VMEM budget / cost hint --------------------------------------------
    block_bytes = tb * bytes_per_elt                       # one x block + one out block
    invariant_bytes = (wrench_dim * z_dim + length * l_out + wrench_dim * l_out) * elt
    vmem_limit = int(min(max(4 * block_bytes + 2 * invariant_bytes + (8 << 20),
                             32 << 20),
                         48 << 20))                        # stay under v7x 64 MiB

    cost = pl.CostEstimate(
        flops=2 * n_batch * wrench_dim * length * (z_dim + l_out),
        transcendentals=n_batch * wrench_dim * l_out,
        bytes_accessed=n_batch * bytes_per_elt + invariant_bytes)

    return pl.pallas_call(
        _wrench_decoder_kernel,
        out_shape=jax.ShapeDtypeStruct((n_batch, wrench_dim, l_out), dtype),
        grid_spec=pltpu.PrefetchScalarGridSpec(
            num_scalar_prefetch=0,
            grid=grid,
            in_specs=[
                pl.BlockSpec((tb, z_dim, length), lambda n: (n, 0, 0)),
                pl.BlockSpec((wrench_dim, z_dim), lambda n: (0, 0)),   # resident
                pl.BlockSpec((length, l_out), lambda n: (0, 0)),       # resident
                pl.BlockSpec((wrench_dim, l_out), lambda n: (0, 0)),   # resident
            ],
            out_specs=pl.BlockSpec((tb, wrench_dim, l_out), lambda n: (n, 0, 0)),
        ),
        compiler_params=pltpu.CompilerParams(
            dimension_semantics=("parallel",),
            vmem_limit_bytes=vmem_limit),
        cost_estimate=cost,
    )(wrench_feature_ncl, wt, scat, const_tbl)


# --------------------------------------------------------------------------- #
# Synthetic params + pure-JAX reference (unfused layer chain) for checking.
# --------------------------------------------------------------------------- #
def init_wrench_decoder_params(key, z_dim=256, wrench_dim=6, dtype=jnp.float32):
    dims = [z_dim, 128, 64, 32, 24, wrench_dim]
    params = []
    for i in range(len(dims) - 1):
        c_in, c_out = dims[i], dims[i + 1]
        key, kw, kb = jax.random.split(key, 3)
        scale = jnp.sqrt(2.0 / (c_in + c_out)).astype(dtype)
        w = jax.random.normal(kw, (c_in, c_out), dtype) * scale   # ConvT1d weight (Cin,Cout,1) squeezed
        b = jax.random.normal(kb, (c_out,), dtype) * 0.01
        params.append((w, b))
    return params


def _reference_forward(wrench_feature_ncl, params):
    """Unfused ConvTranspose1d(k=1, s=2) chain + final tanh (pure JAX)."""
    x = jnp.transpose(wrench_feature_ncl, (0, 2, 1))              # NCL -> NLC
    n_layers = len(params)
    for i, (w, b) in enumerate(params):
        n, l, _ = x.shape
        c_out = w.shape[1]
        even = jnp.einsum("nlc,cd->nld", x, w, precision=_HIGHEST) + b
        y = jnp.zeros((n, 2 * l - 1, c_out), x.dtype) + b
        y = y.at[:, ::2, :].set(even)
        x = jnp.tanh(y) if i == n_layers - 1 else y
    return jnp.transpose(x, (0, 2, 1))                            # NLC -> NCL


if __name__ == "__main__":
    # Small shapes: batch=4, z_dim=32, seq=8  ->  output (4, 6, 225)
    # (batch=4 exercises the batch-blocked path: TB=2, grid=2.)
    Z_DIM, WRENCH_DIM, N, L = 32, 6, 4, 8

    key = jax.random.PRNGKey(0)
    key, kx = jax.random.split(key)
    wrench_feature = jax.random.normal(kx, (N, Z_DIM, L), jnp.float32)  # NCL, like PyTorch

    params = init_wrench_decoder_params(key, z_dim=Z_DIM, wrench_dim=WRENCH_DIM)

    out = jax.jit(wrench_decoder_forward)(wrench_feature, params)
    out = jax.block_until_ready(out)

    ref = _reference_forward(wrench_feature, params)
    assert out.shape == (N, WRENCH_DIM, 32 * L - 31), out.shape
    assert jnp.allclose(out, ref, atol=1e-4, rtol=1e-4), float(jnp.max(jnp.abs(out - ref)))

    print("KERNEL_OK")
</pallas_src>

<mosaic_0001>
module attributes {stable_mosaic.version = 11 : i64} {
  func.func @_wrench_decoder_kernel(%arg0: i32, %arg1: memref<2x32x8xf32, #tpu.memory_space<vmem>>, %arg2: memref<6x32xf32, #tpu.memory_space<vmem>>, %arg3: memref<8x225xf32, #tpu.memory_space<vmem>>, %arg4: memref<6x225xf32, #tpu.memory_space<vmem>>, %arg5: memref<2x6x225xf32, #tpu.memory_space<vmem>>) attributes {dimension_semantics = [#tpu.dimension_semantics<parallel>], iteration_bounds = array<i64: 2>, scalar_prefetch = 0 : i64, scratch_operands = 0 : i64, tpu.core_type = #tpu.core_type<tc>, window_params = [{transform_indices = @transform_0, window_bounds = array<i64: 2, 32, 8>}, {pipeline_mode = #tpu.pipeline_mode<synchronous>, transform_indices = @transform_1, window_bounds = array<i64: 6, 32>}, {pipeline_mode = #tpu.pipeline_mode<synchronous>, transform_indices = @transform_2, window_bounds = array<i64: 8, 225>}, {pipeline_mode = #tpu.pipeline_mode<synchronous>, transform_indices = @transform_3, window_bounds = array<i64: 6, 225>}, {transform_indices = @transform_4, window_bounds = array<i64: 2, 6, 225>}]} {
    %c0 = arith.constant 0 : index
    %c0_0 = arith.constant 0 : index
    %0 = vector.load %arg2[%c0, %c0_0] : memref<6x32xf32, #tpu.memory_space<vmem>>, vector<6x32xf32>
    %c0_1 = arith.constant 0 : index
    %c0_2 = arith.constant 0 : index
    %1 = vector.load %arg3[%c0_1, %c0_2] : memref<8x225xf32, #tpu.memory_space<vmem>>, vector<8x225xf32>
    %c0_3 = arith.constant 0 : index
    %c0_4 = arith.constant 0 : index
    %2 = vector.load %arg4[%c0_3, %c0_4] : memref<6x225xf32, #tpu.memory_space<vmem>>, vector<6x225xf32>
    %c0_5 = arith.constant 0 : index
    %c0_6 = arith.constant 0 : index
    %c0_7 = arith.constant 0 : index
    %3 = vector.load %arg1[%c0_5, %c0_6, %c0_7] : memref<2x32x8xf32, #tpu.memory_space<vmem>>, vector<1x32x8xf32>
    %4 = vector.shape_cast %3 : vector<1x32x8xf32> to vector<32x8xf32>
    %cst = arith.constant dense<0.000000e+00> : vector<6x8xf32>
    %5 = tpu.matmul %0, %4, %cst {dimension_numbers = #tpu.dot_dimension_numbers<[1], [0], [0], [1], [0, 0, 1, 1], [], []>, precision = #tpu.contract_precision<fp32>} : vector<6x32xf32>, vector<32x8xf32>, vector<6x8xf32> -> vector<6x8xf32>
    %cst_8 = arith.constant dense<0.000000e+00> : vector<6x225xf32>
    %6 = tpu.matmul %5, %1, %cst_8 {dimension_numbers = #tpu.dot_dimension_numbers<[1], [0], [0], [1], [0, 0, 1, 1], [], []>, precision = #tpu.contract_precision<fp32>} : vector<6x8xf32>, vector<8x225xf32>, vector<6x225xf32> -> vector<6x225xf32>
    %7 = arith.addf %6, %2 : vector<6x225xf32>
    %8 = math.tanh %7 : vector<6x225xf32>
    %c0_9 = arith.constant 0 : index
    %c0_10 = arith.constant 0 : index
    %c0_11 = arith.constant 0 : index
    %9 = vector.load %arg5[%c0_9, %c0_10, %c0_11] : memref<2x6x225xf32, #tpu.memory_space<vmem>>, vector<1x6x225xf32>
    %10 = vector.shape_cast %9 : vector<1x6x225xf32> to vector<6x225xf32>
    %11 = vector.shape_cast %8 : vector<6x225xf32> to vector<1x6x225xf32>
    tpu.vector_store %arg5[%c0_9, %c0_10, %c0_11], %11 {strides = array<i32>} : memref<2x6x225xf32, #tpu.memory_space<vmem>>, vector<1x6x225xf32>,
    %c1 = arith.constant 1 : index
    %c0_12 = arith.constant 0 : index
    %c0_13 = arith.constant 0 : index
    %12 = vector.load %arg1[%c1, %c0_12, %c0_13] : memref<2x32x8xf32, #tpu.memory_space<vmem>>, vector<1x32x8xf32>
    %13 = vector.shape_cast %12 : vector<1x32x8xf32> to vector<32x8xf32>
    %cst_14 = arith.constant dense<0.000000e+00> : vector<6x8xf32>
    %14 = tpu.matmul %0, %13, %cst_14 {dimension_numbers = #tpu.dot_dimension_numbers<[1], [0], [0], [1], [0, 0, 1, 1], [], []>, precision = #tpu.contract_precision<fp32>} : vector<6x32xf32>, vector<32x8xf32>, vector<6x8xf32> -> vector<6x8xf32>
    %cst_15 = arith.constant dense<0.000000e+00> : vector<6x225xf32>
    %15 = tpu.matmul %14, %1, %cst_15 {dimension_numbers = #tpu.dot_dimension_numbers<[1], [0], [0], [1], [0, 0, 1, 1], [], []>, precision = #tpu.contract_precision<fp32>} : vector<6x8xf32>, vector<8x225xf32>, vector<6x225xf32> -> vector<6x225xf32>
    %16 = arith.addf %15, %2 : vector<6x225xf32>
    %17 = math.tanh %16 : vector<6x225xf32>
    %c1_16 = arith.constant 1 : index
    %c0_17 = arith.constant 0 : index
    %c0_18 = arith.constant 0 : index
    %18 = vector.load %arg5[%c1_16, %c0_17, %c0_18] : memref<2x6x225xf32, #tpu.memory_space<vmem>>, vector<1x6x225xf32>
    %19 = vector.shape_cast %18 : vector<1x6x225xf32> to vector<6x225xf32>
    %20 = vector.shape_cast %17 : vector<6x225xf32> to vector<1x6x225xf32>
    tpu.vector_store %arg5[%c1_16, %c0_17, %c0_18], %20 {strides = array<i32>} : memref<2x6x225xf32, #tpu.memory_space<vmem>>, vector<1x6x225xf32>,
    return
  }
  func.func @transform_0(%arg0: i32) -> (i32, i32, i32) {
    %c0_i32 = arith.constant 0 : i32
    %c0_i32_0 = arith.constant 0 : i32
    %c0_i32_1 = arith.constant 0 : i32
    return %arg0, %c0_i32, %c0_i32_0 : i32, i32, i32
  }
  func.func @transform_1(%arg0: i32) -> (i32, i32) {
    %c0_i32 = arith.constant 0 : i32
    %c0_i32_0 = arith.constant 0 : i32
    %c0_i32_1 = arith.constant 0 : i32
    return %c0_i32, %c0_i32_0 : i32, i32
  }
  func.func @transform_2(%arg0: i32) -> (i32, i32) {
    %c0_i32 = arith.constant 0 : i32
    %c0_i32_0 = arith.constant 0 : i32
    %c0_i32_1 = arith.constant 0 : i32
    return %c0_i32, %c0_i32_0 : i32, i32
  }
  func.func @transform_3(%arg0: i32) -> (i32, i32) {
    %c0_i32 = arith.constant 0 : i32
    %c0_i32_0 = arith.constant 0 : i32
    %c0_i32_1 = arith.constant 0 : i32
    return %c0_i32, %c0_i32_0 : i32, i32
  }
  func.func @transform_4(%arg0: i32) -> (i32, i32, i32) {
    %c0_i32 = arith.constant 0 : i32
    %c0_i32_0 = arith.constant 0 : i32
    %c0_i32_1 = arith.constant 0 : i32
    return %arg0, %c0_i32, %c0_i32_0 : i32, i32, i32
  }
}

</mosaic_0001>

<llo_original>
// kernel: wrench_decoder_forward.1
$region0: #{wrench_decoder_forward.1}
  #allocation0 [shape = 'u32[]', space=smem, size = 0x4, offset = 0x4, fixed_abs, tag = 'smem constant byte address 0x4 - core index']
  #allocation1 [shape = 'u32[72,128]{1,0:T(1,128)}', space=vmem, size = 0x9000, scoped, tag = 'internal scratch']
  %s0 = inlined_call_operand.vmem [shape: f32[4,32,8], index: 0, kind: input, shape index: {}]
  %s1 = inlined_call_operand.vmem [shape: f32[6,32], index: 1, kind: input, shape index: {}]
  %s2 = inlined_call_operand.vmem [shape: f32[8,225], index: 2, kind: input, shape index: {}]
  %s3 = inlined_call_operand.vmem [shape: f32[6,225], index: 3, kind: input, shape index: {}]
  %s4 = inlined_call_operand.vmem [shape: f32[4,6,225], index: 4, kind: output, shape index: {}]
  %s5 = sld [smem:[#allocation0]]
  $region49: #{wrench_decoder_forward.1} parent=0
    _
  %s7 = ssub.s32 1, %s5
  %s8 = scalar_select 0, %s7, %s5
  loop: start=0, step=1, limit=4
  $region2: #{wrench_decoder_forward.1} parent=0 // loop_pre_header
    _
  $region3: #{wrench_decoder_forward.1} parent=0 // loop_header
    %s10 = sphi 0, %s14
    %p11 = scmp.ge.s32.totalorder %s10, 4
    %s20 = sphi 0, %s22
    %s23 = sphi 0, %s20
    %s24 = sphi 0, %s23
    %s40 = sphi 0, %s24
    %s44 = sphi 0, %s44
    %s46 = sphi 0, %s44
    %s47 = sphi 0, %s46
    %s61 = sphi 0, %s47
    %s65 = sphi 0, %s65
    %s67 = sphi 0, %s65
    %s68 = sphi 0, %s67
    %s82 = sphi 0, %s68
    %s86 = sphi 0, %s86
    %s88 = sphi 0, %s86
    %s89 = sphi 0, %s88
    %s103 = sphi 0, %s89
    %s109 = sphi 0, %s111
    %s112 = sphi 0, %s109
    %s113 = sphi 0, %s112
    %s129 = sphi 0, %s113
  $region4: #{wrench_decoder_forward.1} parent=0 // loop_header_branch
    %13 = sbr.rel (%p11) target = $region8
  $region5: #{wrench_decoder_forward.1} parent=0 // loop_body
    %s15 = ssub.s32 %s10, 1
    %s16 = ssub.s32 %s10, 2
    %s17 = sadd.s32 %s10, 1
    %s18 = ssub.s32 %s10, %s17
    %p19 = scmp.eq.s32.totalorder %s18, 0
    %s21 = sadd.s32 %s20, 1
    %s22 = scalar_select %p19, %s20, %s21
    %p25 = pneg %p19
    %p26 = scmp.eq.s32.totalorder %s10, 1
    %p27 = por %p25, %p26
    %p28 = scmp.ne.s32.totalorder %s20, %s23
    %p29 = scmp.eq.s32.totalorder %s10, 0
    %p30 = por %p28, %p29
    %p31 = scmp.ne.s32.totalorder %s20, %s23
    %p32 = scmp.eq.s32.totalorder %s15, 1
    %p33 = por %p31, %p32
    %p34 = scmp.ne.s32.totalorder %s23, %s24
    %p35 = scmp.eq.s32.totalorder %s15, 0
    %p36 = por %p34, %p35
    %p37 = scmp.ne.s32.totalorder %s23, %s24
    %p38 = scmp.eq.s32.totalorder %s16, 1
    %p39 = por %p37, %p38
    %p41 = scmp.ne.s32.totalorder %s24, %s40
    %p42 = scmp.eq.s32.totalorder %s16, 0
    %p43 = por %p41, %p42
    %s45 = sadd.s32 %s44, 1
    %p48 = scmp.eq.s32.totalorder %s10, 1
    %p49 = scmp.ne.s32.totalorder %s44, %s46
    %p50 = scmp.eq.s32.totalorder %s10, 0
    %p51 = por %p49, %p50
    %p52 = scmp.ne.s32.totalorder %s44, %s46
    %p53 = scmp.eq.s32.totalorder %s15, 1
    %p54 = por %p52, %p53
    %p55 = scmp.ne.s32.totalorder %s46, %s47
    %p56 = scmp.eq.s32.totalorder %s15, 0
    %p57 = por %p55, %p56
    %p58 = scmp.ne.s32.totalorder %s46, %s47
    %p59 = scmp.eq.s32.totalorder %s16, 1
    %p60 = por %p58, %p59
    %p62 = scmp.ne.s32.totalorder %s47, %s61
    %p63 = scmp.eq.s32.totalorder %s16, 0
    %p64 = por %p62, %p63
    %s66 = sadd.s32 %s65, 1
    %p69 = scmp.eq.s32.totalorder %s10, 1
    %p70 = scmp.ne.s32.totalorder %s65, %s67
    %p71 = scmp.eq.s32.totalorder %s10, 0
    %p72 = por %p70, %p71
    %p73 = scmp.ne.s32.totalorder %s65, %s67
    %p74 = scmp.eq.s32.totalorder %s15, 1
    %p75 = por %p73, %p74
    %p76 = scmp.ne.s32.totalorder %s67, %s68
    %p77 = scmp.eq.s32.totalorder %s15, 0
    %p78 = por %p76, %p77
    %p79 = scmp.ne.s32.totalorder %s67, %s68
    %p80 = scmp.eq.s32.totalorder %s16, 1
    %p81 = por %p79, %p80
    %p83 = scmp.ne.s32.totalorder %s68, %s82
    %p84 = scmp.eq.s32.totalorder %s16, 0
    %p85 = por %p83, %p84
    %s87 = sadd.s32 %s86, 1
    %p90 = scmp.eq.s32.totalorder %s10, 1
    %p91 = scmp.ne.s32.totalorder %s86, %s88
    %p92 = scmp.eq.s32.totalorder %s10, 0
    %p93 = por %p91, %p92
    %p94 = scmp.ne.s32.totalorder %s86, %s88
    %p95 = scmp.eq.s32.totalorder %s15, 1
    %p96 = por %p94, %p95
    %p97 = scmp.ne.s32.totalorder %s88, %s89
    %p98 = scmp.eq.s32.totalorder %s15, 0
    %p99 = por %p97, %p98
    %p100 = scmp.ne.s32.totalorder %s88, %s89
    %p101 = scmp.eq.s32.totalorder %s16, 1
    %p102 = por %p100, %p101
    %p104 = scmp.ne.s32.totalorder %s89, %s103
    %p105 = scmp.eq.s32.totalorder %s16, 0
    %p106 = por %p104, %p105
    %s107 = ssub.s32 %s10, %s17
    %p108 = scmp.eq.s32.totalorder %s107, 0
    %s110 = sadd.s32 %s109, 1
    %s111 = scalar_select %p108, %s109, %s110
    %p114 = pneg %p108
    %p115 = scmp.eq.s32.totalorder %s10, 1
    %p116 = por %p114, %p115
    %p117 = scmp.ne.s32.totalorder %s109, %s112
    %p118 = scmp.eq.s32.totalorder %s10, 0
    %p119 = por %p117, %p118
    %p120 = scmp.ne.s32.totalorder %s109, %s112
    %p121 = scmp.eq.s32.totalorder %s15, 1
    %p122 = por %p120, %p121
    %p123 = scmp.ne.s32.totalorder %s112, %s113
    %p124 = scmp.eq.s32.totalorder %s15, 0
    %p125 = por %p123, %p124
    %p126 = scmp.ne.s32.totalorder %s112, %s113
    %p127 = scmp.eq.s32.totalorder %s16, 1
    %p128 = por %p126, %p127
    %p130 = scmp.ne.s32.totalorder %s113, %s129
    %p131 = scmp.eq.s32.totalorder %s16, 0
    %p132 = por %p130, %p131
    %p133 = scmp.le.s32.totalorder 1, %s10
    %p134 = scmp.lt.s32.totalorder %s10, 3
    %p135 = pnand %p133, %p134
    %p136 = pneg %p135
    // Predicated region
    $region9: #{wrench_decoder_forward.1} parent=5 // pred_check
      _
    $region10: #{wrench_decoder_forward.1} parent=5 // pred_check_branch
      %138 = sbr.rel (%p135) target = $region12
    $region11: #{wrench_decoder_forward.1} parent=5 // pred_region
      %s139 = ssub.s32 %s10, 1
      // Predicated region
      $region13: #{wrench_decoder_forward.1} parent=11 // pred_check
        %p140 = pneg %p57
      $region14: #{wrench_decoder_forward.1} parent=11 // pred_check_branch
        %142 = sbr.rel (%p140) target = $region16
      $region15: #{wrench_decoder_forward.1} parent=11 // pred_region
        _
      $region16: #{wrench_decoder_forward.1} parent=11 // pred_fallthru
        _
      // Predicated region
      $region17: #{wrench_decoder_forward.1} parent=11 // pred_check
        %p143 = pneg %p78
      $region18: #{wrench_decoder_forward.1} parent=11 // pred_check_branch
        %145 = sbr.rel (%p143) target = $region20
      $region19: #{wrench_decoder_forward.1} parent=11 // pred_region
        _
      $region20: #{wrench_decoder_forward.1} parent=11 // pred_fallthru
        _
      // Predicated region
      $region21: #{wrench_decoder_forward.1} parent=11 // pred_check
        %p146 = pneg %p99
      $region22: #{wrench_decoder_forward.1} parent=11 // pred_check_branch
        %148 = sbr.rel (%p146) target = $region24
      $region23: #{wrench_decoder_forward.1} parent=11 // pred_region
        _
      $region24: #{wrench_decoder_forward.1} parent=11 // pred_fallthru
        _
    $region12: #{wrench_decoder_forward.1} parent=5 // pred_fallthru
      _
    %p149 = scmp.lt.s32.totalorder %s10, 2
    // Predicated region
    $region25: #{wrench_decoder_forward.1} parent=5 // pred_check
      %p150 = pneg %p149
    $region26: #{wrench_decoder_forward.1} parent=5 // pred_check_branch
      %152 = sbr.rel (%p150) target = $region28
    $region27: #{wrench_decoder_forward.1} parent=5 // pred_region
      // Predicated region
      $region29: #{wrench_decoder_forward.1} parent=27 // pred_check
        %p153 = pneg %p30
      $region30: #{wrench_decoder_forward.1} parent=27 // pred_check_branch
        %155 = sbr.rel (%p153) target = $region32
      $region31: #{wrench_decoder_forward.1} parent=27 // pred_region
        %s156 = smul.u32 2, %s10
        %p157 = scmp.lt.s32.totalorder %s156, 3
        %s158 = scalar_select %p157, %s156, 3
        %s159 = smul.addr %s158, 4
        %s160 = smul.addr %s159, 8
        %s161 = scalar_lea.vmem %s0, %s160
        %s162 = smul.u32 2, %s10
      $region32: #{wrench_decoder_forward.1} parent=27 // pred_fallthru
        _
    $region28: #{wrench_decoder_forward.1} parent=5 // pred_fallthru
      _
    %p163 = scmp.le.s32.totalorder 1, %s10
    %p164 = scmp.lt.s32.totalorder %s10, 3
    %p165 = pnand %p163, %p164
    %p166 = pneg %p165
    // Predicated region
    $region33: #{wrench_decoder_forward.1} parent=5 // pred_check
      _
    $region34: #{wrench_decoder_forward.1} parent=5 // pred_check_branch
      %168 = sbr.rel (%p165) target = $region36
    $region35: #{wrench_decoder_forward.1} parent=5 // pred_region
      %s169 = ssub.s32 %s10, 1
      %s170 = smul.u32 2, %s15
      %p171 = scmp.lt.s32.totalorder %s170, 3
      %s172 = scalar_select %p171, %s170, 3
      %s173 = smul.addr %s172, 4
      %s174 = smul.addr %s173, 8
      %s175 = scalar_lea.vmem %s0, %s174
      %p176 = pneg %p36
      %p177 = pneg %p33
      %p178 = pneg %p57
      %p179 = pneg %p54
      %p180 = pneg %p78
      %p181 = pneg %p75
      %p182 = pneg %p99
      %p183 = pneg %p96
      %p184 = pneg %p125
      %p185 = pneg %p122
      %s186 = smul.u32 2, %s15
      %p187 = scmp.lt.s32.totalorder %s186, 3
      %s188 = scalar_select %p187, %s186, 3
      %s189 = smul.addr %s188, 2
      %s190 = smul.addr %s189, 8
      %s191 = scalar_lea.vmem %s4, %s190
      %s192 = smul.u32 2, %s15
      %p193 = scmp.lt.s32.totalorder %s192, 3
      %s194 = scalar_select %p193, %s192, 3
      %s195 = smul.addr %s194, 4
      %s196 = smul.addr %s195, 8
      %s197 = scalar_lea.vmem %s0, %s196
      %s198 = smul.u32 2, %s15
      %s199 = smul.u32 2, %s15
      %p200 = scmp.lt.s32.totalorder %s199, 3
      %s201 = scalar_select %p200, %s199, 3
      %s202 = smul.addr %s201, 2
      %s203 = smul.addr %s202, 8
      %s204 = scalar_lea.vmem %s4, %s203
      %s205 = smul.u32 2, %s15
      %v206 = vld [vmem:[%s1] sm:$0x3f]
      %v207 = vld [vmem:[%s2] sm:$0xff]
      %v208 = vld [vmem:[%s2 + $0x8] sm:$0xff]
      %v209 = vld [vmem:[%s3] sm:$0x3f]
      %v210 = vld [vmem:[%s3 + $0x8] sm:$0x3f]
      %v211 = vld [vmem:[%s197] sm:$0xff]
      %v212 = vld [vmem:[%s197 + $0x8] sm:$0xff]
      %v213 = vld [vmem:[%s197 + $0x10] sm:$0xff]
      %v214 = vld [vmem:[%s197 + $0x18] sm:$0xff]
      %vm215 = vcmask 261120
      %v217 = vsel %vm215, %v206, 0
      %219 = vmatpush.msra.mxu0 0.0
      %220 = vmatpush.msra.mxu0 0.0
      %221 = vmatpush.msra.mxu0 0.0
      %222 = vmatpush.msra.mxu0 0.0
      %223 = vmatpush.msra.mxu0 0.0
      %224 = vmatpush.msra.mxu0 0.0
      %225 = vmatpush.msra.mxu0 0.0
      %226 = vmatpush.msra.mxu0 0.0
      %227 = vmatpush.msra.mxu0 0.0
      %228 = vmatpush.msra.mxu0 0.0
      %229 = vmatpush.msra.mxu0 0.0
      %230 = vmatpush.msra.mxu0 0.0
      %v231 = vand.u32 %v214, 4294901760
      %232 = vmatpush.msra.mxu0 %v231
      %v233 = vand.u32 %v213, 4294901760
      %234 = vmatpush.msra.mxu0 %v233
      %v235 = vand.u32 %v212, 4294901760
      %236 = vmatpush.msra.mxu0 %v235
      %v237 = vand.u32 %v211, 4294901760
      %238 = vmatpush.msra.mxu0 %v237
      %v239 = vand.u32 %v217, 4294901760
      %v240 = vsub.f32 %v217, %v239
      %v241 = vand.u32 %v240, 4294901760
      %v242 = vsub.f32 %v240, %v241
      %v243 = vand.u32 %v242, 4294901760
      %244 = vmatmul.f32.gmra.mxu0 %v243
      %v245 = vpop.f32.mrf.mxu0
      %v246 = vadd.f32 0.0, %v245
      %247 = vdwg.mxu0
      %248 = vmatpush.msra.mxu0 0.0
      %249 = vmatpush.msra.mxu0 0.0
      %250 = vmatpush.msra.mxu0 0.0
      %251 = vmatpush.msra.mxu0 0.0
      %252 = vmatpush.msra.mxu0 0.0
      %253 = vmatpush.msra.mxu0 0.0
      %254 = vmatpush.msra.mxu0 0.0
      %255 = vmatpush.msra.mxu0 0.0
      %256 = vmatpush.msra.mxu0 0.0
      %257 = vmatpush.msra.mxu0 0.0
      %258 = vmatpush.msra.mxu0 0.0
      %259 = vmatpush.msra.mxu0 0.0
      %v260 = vand.u32 %v214, 4294901760
      %v261 = vsub.f32 %v214, %v260
      %v262 = vand.u32 %v261, 4294901760
      %v263 = vsub.f32 %v261, %v262
      %v264 = vand.u32 %v263, 4294901760
      %265 = vmatpush.msra.mxu0 %v264
      %v266 = vand.u32 %v213, 4294901760
      %v267 = vsub.f32 %v213, %v266
      %v268 = vand.u32 %v267, 4294901760
      %v269 = vsub.f32 %v267, %v268
      %v270 = vand.u32 %v269, 4294901760
      %271 = vmatpush.msra.mxu0 %v270
      %v272 = vand.u32 %v212, 4294901760
      %v273 = vsub.f32 %v212, %v272
      %v274 = vand.u32 %v273, 4294901760
      %v275 = vsub.f32 %v273, %v274
      %v276 = vand.u32 %v275, 4294901760
      %277 = vmatpush.msra.mxu0 %v276
      %v278 = vand.u32 %v211, 4294901760
      %v279 = vsub.f32 %v211, %v278
      %v280 = vand.u32 %v279, 4294901760
      %v281 = vsub.f32 %v279, %v280
      %v282 = vand.u32 %v281, 4294901760
      %283 = vmatpush.msra.mxu0 %v282
      %v284 = vand.u32 %v217, 4294901760
      %285 = vmatmul.f32.gmra.mxu0 %v284
      %v286 = vpop.f32.mrf.mxu0
      %v287 = vadd.f32 %v246, %v286
      %288 = vdwg.mxu0
      %289 = vmatpush.msra.mxu0 0.0
      %290 = vmatpush.msra.mxu0 0.0
      %291 = vmatpush.msra.mxu0 0.0
      %292 = vmatpush.msra.mxu0 0.0
      %293 = vmatpush.msra.mxu0 0.0
      %294 = vmatpush.msra.mxu0 0.0
      %295 = vmatpush.msra.mxu0 0.0
      %296 = vmatpush.msra.mxu0 0.0
      %297 = vmatpush.msra.mxu0 0.0
      %298 = vmatpush.msra.mxu0 0.0
      %299 = vmatpush.msra.mxu0 0.0
      %300 = vmatpush.msra.mxu0 0.0
      %v301 = vand.u32 %v214, 4294901760
      %v302 = vsub.f32 %v214, %v301
      %303 = vmatpush.msra.mxu0 %v302
      %v304 = vand.u32 %v213, 4294901760
      %v305 = vsub.f32 %v213, %v304
      %306 = vmatpush.msra.mxu0 %v305
      %v307 = vand.u32 %v212, 4294901760
      %v308 = vsub.f32 %v212, %v307
      %309 = vmatpush.msra.mxu0 %v308
      %v310 = vand.u32 %v211, 4294901760
      %v311 = vsub.f32 %v211, %v310
      %312 = vmatpush.msra.mxu0 %v311
      %v313 = vand.u32 %v217, 4294901760
      %v314 = vsub.f32 %v217, %v313
      %315 = vmatmul.f32.gmra.mxu0 %v314
      %v316 = vpop.f32.mrf.mxu0
      %v317 = vadd.f32 %v287, %v316
      %318 = vdwg.mxu0
      %319 = vmatpush.msra.mxu0 0.0
      %320 = vmatpush.msra.mxu0 0.0
      %321 = vmatpush.msra.mxu0 0.0
      %322 = vmatpush.msra.mxu0 0.0
      %323 = vmatpush.msra.mxu0 0.0
      %324 = vmatpush.msra.mxu0 0.0
      %325 = vmatpush.msra.mxu0 0.0
      %326 = vmatpush.msra.mxu0 0.0
      %327 = vmatpush.msra.mxu0 0.0
      %328 = vmatpush.msra.mxu0 0.0
      %329 = vmatpush.msra.mxu0 0.0
      %330 = vmatpush.msra.mxu0 0.0
      %v331 = vand.u32 %v214, 4294901760
      %332 = vmatpush.msra.mxu0 %v331
      %v333 = vand.u32 %v213, 4294901760
      %334 = vmatpush.msra.mxu0 %v333
      %v335 = vand.u32 %v212, 4294901760
      %336 = vmatpush.msra.mxu0 %v335
      %v337 = vand.u32 %v211, 4294901760
      %338 = vmatpush.msra.mxu0 %v337
      %v339 = vand.u32 %v217, 4294901760
      %v340 = vsub.f32 %v217, %v339
      %v341 = vand.u32 %v340, 4294901760
      %342 = vmatmul.f32.gmra.mxu0 %v341
      %v343 = vpop.f32.mrf.mxu0
      %v344 = vadd.f32 %v317, %v343
      %345 = vdwg.mxu0
      %346 = vmatpush.msra.mxu0 0.0
      %347 = vmatpush.msra.mxu0 0.0
      %348 = vmatpush.msra.mxu0 0.0
      %349 = vmatpush.msra.mxu0 0.0
      %350 = vmatpush.msra.mxu0 0.0
      %351 = vmatpush.msra.mxu0 0.0
      %352 = vmatpush.msra.mxu0 0.0
      %353 = vmatpush.msra.mxu0 0.0
      %354 = vmatpush.msra.mxu0 0.0
      %355 = vmatpush.msra.mxu0 0.0
      %356 = vmatpush.msra.mxu0 0.0
      %357 = vmatpush.msra.mxu0 0.0
      %v358 = vand.u32 %v214, 4294901760
      %v359 = vsub.f32 %v214, %v358
      %v360 = vand.u32 %v359, 4294901760
      %361 = vmatpush.msra.mxu0 %v360
      %v362 = vand.u32 %v213, 4294901760
      %v363 = vsub.f32 %v213, %v362
      %v364 = vand.u32 %v363, 4294901760
      %365 = vmatpush.msra.mxu0 %v364
      %v366 = vand.u32 %v212, 4294901760
      %v367 = vsub.f32 %v212, %v366
      %v368 = vand.u32 %v367, 4294901760
      %369 = vmatpush.msra.mxu0 %v368
      %v370 = vand.u32 %v211, 4294901760
      %v371 = vsub.f32 %v211, %v370
      %v372 = vand.u32 %v371, 4294901760
      %373 = vmatpush.msra.mxu0 %v372
      %v374 = vand.u32 %v217, 4294901760
      %375 = vmatmul.f32.gmra.mxu0 %v374
      %v376 = vpop.f32.mrf.mxu0
      %v377 = vadd.f32 %v344, %v376
      %378 = vdwg.mxu0
      %379 = vmatpush.msra.mxu0 0.0
      %380 = vmatpush.msra.mxu0 0.0
      %381 = vmatpush.msra.mxu0 0.0
      %382 = vmatpush.msra.mxu0 0.0
      %383 = vmatpush.msra.mxu0 0.0
      %384 = vmatpush.msra.mxu0 0.0
      %385 = vmatpush.msra.mxu0 0.0
      %386 = vmatpush.msra.mxu0 0.0
      %387 = vmatpush.msra.mxu0 0.0
      %388 = vmatpush.msra.mxu0 0.0
      %389 = vmatpush.msra.mxu0 0.0
      %390 = vmatpush.msra.mxu0 0.0
      %v391 = vand.u32 %v214, 4294901760
      %392 = vmatpush.msra.mxu0 %v391
      %v393 = vand.u32 %v213, 4294901760
      %394 = vmatpush.msra.mxu0 %v393
      %v395 = vand.u32 %v212, 4294901760
      %396 = vmatpush.msra.mxu0 %v395
      %v397 = vand.u32 %v211, 4294901760
      %398 = vmatpush.msra.mxu0 %v397
      %v399 = vand.u32 %v217, 4294901760
      %400 = vmatmul.f32.gmra.mxu0 %v399
      %v401 = vpop.f32.mrf.mxu0
      %v402 = vadd.f32 %v377, %v401
      %403 = vdwg.mxu0
      %vm404 = vcmask 64512
      %v406 = vsel %vm404, %v402, 0
      %408 = vmatpush.msra.mxu0 0.0
      %409 = vmatpush.msra.mxu0 0.0
      %410 = vmatpush.msra.mxu0 0.0
      %411 = vmatpush.msra.mxu0 0.0
      %412 = vmatpush.msra.mxu0 0.0
      %413 = vmatpush.msra.mxu0 0.0
      %414 = vmatpush.msra.mxu0 0.0
      %415 = vmatpush.msra.mxu0 0.0
      %416 = vmatpush.msra.mxu0 0.0
      %417 = vmatpush.msra.mxu0 0.0
      %418 = vmatpush.msra.mxu0 0.0
      %419 = vmatpush.msra.mxu0 0.0
      %420 = vmatpush.msra.mxu0 0.0
      %421 = vmatpush.msra.mxu0 0.0
      %422 = vmatpush.msra.mxu0 0.0
      %v423 = vand.u32 %v207, 4294901760
      %424 = vmatpush.msra.mxu0 %v423
      %v425 = vand.u32 %v406, 4294901760
      %v426 = vsub.f32 %v406, %v425
      %v427 = vand.u32 %v426, 4294901760
      %v428 = vsub.f32 %v426, %v427
      %v429 = vand.u32 %v428, 4294901760
      %430 = vmatmul.f32.gmra.mxu0 %v429
      %v431 = vpop.f32.mrf.mxu0
      %v432 = vadd.f32 %v209, %v431
      %433 = vdwg.mxu0
      %434 = vmatpush.msra.mxu0 0.0
      %435 = vmatpush.msra.mxu0 0.0
      %436 = vmatpush.msra.mxu0 0.0
      %437 = vmatpush.msra.mxu0 0.0
      %438 = vmatpush.msra.mxu0 0.0
      %439 = vmatpush.msra.mxu0 0.0
      %440 = vmatpush.msra.mxu0 0.0
      %441 = vmatpush.msra.mxu0 0.0
      %442 = vmatpush.msra.mxu0 0.0
      %443 = vmatpush.msra.mxu0 0.0
      %444 = vmatpush.msra.mxu0 0.0
      %445 = vmatpush.msra.mxu0 0.0
      %446 = vmatpush.msra.mxu0 0.0
      %447 = vmatpush.msra.mxu0 0.0
      %448 = vmatpush.msra.mxu0 0.0
      %v449 = vand.u32 %v207, 4294901760
      %v450 = vsub.f32 %v207, %v449
      %v451 = vand.u32 %v450, 4294901760
      %v452 = vsub.f32 %v450, %v451
      %v453 = vand.u32 %v452, 4294901760
      %454 = vmatpush.msra.mxu0 %v453
      %v455 = vand.u32 %v406, 4294901760
      %456 = vmatmul.f32.gmra.mxu0 %v455
      %v457 = vpop.f32.mrf.mxu0
      %v458 = vadd.f32 %v432, %v457
      %459 = vdwg.mxu0
      %460 = vmatpush.msra.mxu0 0.0
      %461 = vmatpush.msra.mxu0 0.0
      %462 = vmatpush.msra.mxu0 0.0
      %463 = vmatpush.msra.mxu0 0.0
      %464 = vmatpush.msra.mxu0 0.0
      %465 = vmatpush.msra.mxu0 0.0
      %466 = vmatpush.msra.mxu0 0.0
      %467 = vmatpush.msra.mxu0 0.0
      %468 = vmatpush.msra.mxu0 0.0
      %469 = vmatpush.msra.mxu0 0.0
      %470 = vmatpush.msra.mxu0 0.0
      %471 = vmatpush.msra.mxu0 0.0
      %472 = vmatpush.msra.mxu0 0.0
      %473 = vmatpush.msra.mxu0 0.0
      %474 = vmatpush.msra.mxu0 0.0
      %v475 = vand.u32 %v207, 4294901760
      %v476 = vsub.f32 %v207, %v475
      %477 = vmatpush.msra.mxu0 %v476
      %v478 = vand.u32 %v406, 4294901760
      %v479 = vsub.f32 %v406, %v478
      %480 = vmatmul.f32.gmra.mxu0 %v479
      %v481 = vpop.f32.mrf.mxu0
      %v482 = vadd.f32 %v458, %v481
      %483 = vdwg.mxu0
      %484 = vmatpush.msra.mxu0 0.0
      %485 = vmatpush.msra.mxu0 0.0
      %486 = vmatpush.msra.mxu0 0.0
      %487 = vmatpush.msra.mxu0 0.0
      %488 = vmatpush.msra.mxu0 0.0
      %489 = vmatpush.msra.mxu0 0.0
      %490 = vmatpush.msra.mxu0 0.0
      %491 = vmatpush.msra.mxu0 0.0
      %492 = vmatpush.msra.mxu0 0.0
      %493 = vmatpush.msra.mxu0 0.0
      %494 = vmatpush.msra.mxu0 0.0
      %495 = vmatpush.msra.mxu0 0.0
      %496 = vmatpush.msra.mxu0 0.0
      %497 = vmatpush.msra.mxu0 0.0
      %498 = vmatpush.msra.mxu0 0.0
      %v499 = vand.u32 %v207, 4294901760
      %500 = vmatpush.msra.mxu0 %v499
      %v501 = vand.u32 %v406, 4294901760
      %v502 = vsub.f32 %v406, %v501
      %v503 = vand.u32 %v502, 4294901760
      %504 = vmatmul.f32.gmra.mxu0 %v503
      %v505 = vpop.f32.mrf.mxu0
      %v506 = vadd.f32 %v482, %v505
      %507 = vdwg.mxu0
      %508 = vmatpush.msra.mxu0 0.0
      %509 = vmatpush.msra.mxu0 0.0
      %510 = vmatpush.msra.mxu0 0.0
      %511 = vmatpush.msra.mxu0 0.0
      %512 = vmatpush.msra.mxu0 0.0
      %513 = vmatpush.msra.mxu0 0.0
      %514 = vmatpush.msra.mxu0 0.0
      %515 = vmatpush.msra.mxu0 0.0
      %516 = vmatpush.msra.mxu0 0.0
      %517 = vmatpush.msra.mxu0 0.0
      %518 = vmatpush.msra.mxu0 0.0
      %519 = vmatpush.msra.mxu0 0.0
      %520 = vmatpush.msra.mxu0 0.0
      %521 = vmatpush.msra.mxu0 0.0
      %522 = vmatpush.msra.mxu0 0.0
      %v523 = vand.u32 %v207, 4294901760
      %v524 = vsub.f32 %v207, %v523
      %v525 = vand.u32 %v524, 4294901760
      %526 = vmatpush.msra.mxu0 %v525
      %v527 = vand.u32 %v406, 4294901760
      %528 = vmatmul.f32.gmra.mxu0 %v527
      %v529 = vpop.f32.mrf.mxu0
      %v530 = vadd.f32 %v506, %v529
      %531 = vdwg.mxu0
      %532 = vmatpush.msra.mxu0 0.0
      %533 = vmatpush.msra.mxu0 0.0
      %534 = vmatpush.msra.mxu0 0.0
      %535 = vmatpush.msra.mxu0 0.0
      %536 = vmatpush.msra.mxu0 0.0
      %537 = vmatpush.msra.mxu0 0.0
      %538 = vmatpush.msra.mxu0 0.0
      %539 = vmatpush.msra.mxu0 0.0
      %540 = vmatpush.msra.mxu0 0.0
      %541 = vmatpush.msra.mxu0 0.0
      %542 = vmatpush.msra.mxu0 0.0
      %543 = vmatpush.msra.mxu0 0.0
      %544 = vmatpush.msra.mxu0 0.0
      %545 = vmatpush.msra.mxu0 0.0
      %546 = vmatpush.msra.mxu0 0.0
      %v547 = vand.u32 %v207, 4294901760
      %548 = vmatpush.msra.mxu0 %v547
      %v549 = vand.u32 %v406, 4294901760
      %550 = vmatmul.f32.gmra.mxu0 %v549
      %v551 = vpop.f32.mrf.mxu0
      %v552 = vadd.f32 %v530, %v551
      %553 = vdwg.mxu0
      %554 = vmatpush.msra.mxu0 0.0
      %555 = vmatpush.msra.mxu0 0.0
      %556 = vmatpush.msra.mxu0 0.0
      %557 = vmatpush.msra.mxu0 0.0
      %558 = vmatpush.msra.mxu0 0.0
      %559 = vmatpush.msra.mxu0 0.0
      %560 = vmatpush.msra.mxu0 0.0
      %561 = vmatpush.msra.mxu0 0.0
      %562 = vmatpush.msra.mxu0 0.0
      %563 = vmatpush.msra.mxu0 0.0
      %564 = vmatpush.msra.mxu0 0.0
      %565 = vmatpush.msra.mxu0 0.0
      %566 = vmatpush.msra.mxu0 0.0
      %567 = vmatpush.msra.mxu0 0.0
      %568 = vmatpush.msra.mxu0 0.0
      %v569 = vand.u32 %v208, 4294901760
      %570 = vmatpush.msra.mxu0 %v569
      %v571 = vand.u32 %v406, 4294901760
      %v572 = vsub.f32 %v406, %v571
      %v573 = vand.u32 %v572, 4294901760
      %v574 = vsub.f32 %v572, %v573
      %v575 = vand.u32 %v574, 4294901760
      %576 = vmatmul.f32.gmra.mxu0 %v575
      %v577 = vpop.f32.mrf.mxu0
      %v578 = vadd.f32 %v210, %v577
      %579 = vdwg.mxu0
      %580 = vmatpush.msra.mxu0 0.0
      %581 = vmatpush.msra.mxu0 0.0
      %582 = vmatpush.msra.mxu0 0.0
      %583 = vmatpush.msra.mxu0 0.0
      %584 = vmatpush.msra.mxu0 0.0
      %585 = vmatpush.msra.mxu0 0.0
      %586 = vmatpush.msra.mxu0 0.0
      %587 = vmatpush.msra.mxu0 0.0
      %588 = vmatpush.msra.mxu0 0.0
      %589 = vmatpush.msra.mxu0 0.0
      %590 = vmatpush.msra.mxu0 0.0
      %591 = vmatpush.msra.mxu0 0.0
      %592 = vmatpush.msra.mxu0 0.0
      %593 = vmatpush.msra.mxu0 0.0
      %594 = vmatpush.msra.mxu0 0.0
      %v595 = vand.u32 %v208, 4294901760
      %v596 = vsub.f32 %v208, %v595
      %v597 = vand.u32 %v596, 4294901760
      %v598 = vsub.f32 %v596, %v597
      %v599 = vand.u32 %v598, 4294901760
      %600 = vmatpush.msra.mxu0 %v599
      %v601 = vand.u32 %v406, 4294901760
      %602 = vmatmul.f32.gmra.mxu0 %v601
      %v603 = vpop.f32.mrf.mxu0
      %v604 = vadd.f32 %v578, %v603
      %605 = vdwg.mxu0
      %606 = vmatpush.msra.mxu0 0.0
      %607 = vmatpush.msra.mxu0 0.0
      %608 = vmatpush.msra.mxu0 0.0
      %609 = vmatpush.msra.mxu0 0.0
      %610 = vmatpush.msra.mxu0 0.0
      %611 = vmatpush.msra.mxu0 0.0
      %612 = vmatpush.msra.mxu0 0.0
      %613 = vmatpush.msra.mxu0 0.0
      %614 = vmatpush.msra.mxu0 0.0
      %615 = vmatpush.msra.mxu0 0.0
      %616 = vmatpush.msra.mxu0 0.0
      %617 = vmatpush.msra.mxu0 0.0
      %618 = vmatpush.msra.mxu0 0.0
      %619 = vmatpush.msra.mxu0 0.0
      %620 = vmatpush.msra.mxu0 0.0
      %v621 = vand.u32 %v208, 4294901760
      %v622 = vsub.f32 %v208, %v621
      %623 = vmatpush.msra.mxu0 %v622
      %v624 = vand.u32 %v406, 4294901760
      %v625 = vsub.f32 %v406, %v624
      %626 = vmatmul.f32.gmra.mxu0 %v625
      %v627 = vpop.f32.mrf.mxu0
      %v628 = vadd.f32 %v604, %v627
      %629 = vdwg.mxu0
      %630 = vmatpush.msra.mxu0 0.0
      %631 = vmatpush.msra.mxu0 0.0
      %632 = vmatpush.msra.mxu0 0.0
      %633 = vmatpush.msra.mxu0 0.0
      %634 = vmatpush.msra.mxu0 0.0
      %635 = vmatpush.msra.mxu0 0.0
      %636 = vmatpush.msra.mxu0 0.0
      %637 = vmatpush.msra.mxu0 0.0
      %638 = vmatpush.msra.mxu0 0.0
      %639 = vmatpush.msra.mxu0 0.0
      %640 = vmatpush.msra.mxu0 0.0
      %641 = vmatpush.msra.mxu0 0.0
      %642 = vmatpush.msra.mxu0 0.0
      %643 = vmatpush.msra.mxu0 0.0
      %644 = vmatpush.msra.mxu0 0.0
      %v645 = vand.u32 %v208, 4294901760
      %646 = vmatpush.msra.mxu0 %v645
      %v647 = vand.u32 %v406, 4294901760
      %v648 = vsub.f32 %v406, %v647
      %v649 = vand.u32 %v648, 4294901760
      %650 = vmatmul.f32.gmra.mxu0 %v649
      %v651 = vpop.f32.mrf.mxu0
      %v652 = vadd.f32 %v628, %v651
      %653 = vdwg.mxu0
      %654 = vmatpush.msra.mxu0 0.0
      %655 = vmatpush.msra.mxu0 0.0
      %656 = vmatpush.msra.mxu0 0.0
      %657 = vmatpush.msra.mxu0 0.0
      %658 = vmatpush.msra.mxu0 0.0
      %659 = vmatpush.msra.mxu0 0.0
      %660 = vmatpush.msra.mxu0 0.0
      %661 = vmatpush.msra.mxu0 0.0
      %662 = vmatpush.msra.mxu0 0.0
      %663 = vmatpush.msra.mxu0 0.0
      %664 = vmatpush.msra.mxu0 0.0
      %665 = vmatpush.msra.mxu0 0.0
      %666 = vmatpush.msra.mxu0 0.0
      %667 = vmatpush.msra.mxu0 0.0
      %668 = vmatpush.msra.mxu0 0.0
      %v669 = vand.u32 %v208, 4294901760
      %v670 = vsub.f32 %v208, %v669
      %v671 = vand.u32 %v670, 4294901760
      %672 = vmatpush.msra.mxu0 %v671
      %v673 = vand.u32 %v406, 4294901760
      %674 = vmatmul.f32.gmra.mxu0 %v673
      %v675 = vpop.f32.mrf.mxu0
      %v676 = vadd.f32 %v652, %v675
      %677 = vdwg.mxu0
      %678 = vmatpush.msra.mxu0 0.0
      %679 = vmatpush.msra.mxu0 0.0
      %680 = vmatpush.msra.mxu0 0.0
      %681 = vmatpush.msra.mxu0 0.0
      %682 = vmatpush.msra.mxu0 0.0
      %683 = vmatpush.msra.mxu0 0.0
      %684 = vmatpush.msra.mxu0 0.0
      %685 = vmatpush.msra.mxu0 0.0
      %686 = vmatpush.msra.mxu0 0.0
      %687 = vmatpush.msra.mxu0 0.0
      %688 = vmatpush.msra.mxu0 0.0
      %689 = vmatpush.msra.mxu0 0.0
      %690 = vmatpush.msra.mxu0 0.0
      %691 = vmatpush.msra.mxu0 0.0
      %692 = vmatpush.msra.mxu0 0.0
      %v693 = vand.u32 %v208, 4294901760
      %694 = vmatpush.msra.mxu0 %v693
      %v695 = vand.u32 %v406, 4294901760
      %696 = vmatmul.f32.gmra.mxu0 %v695
      %v697 = vpop.f32.mrf.mxu0
      %v698 = vadd.f32 %v676, %v697
      %699 = vdwg.mxu0
      %v700 = vtanh.pop %v552
      %v701 = vtanh.pop %v698
      %702 = vst [vmem:[%s204] sm:$0x3f] %v700
      %vm703 = vcmask 791552
      %704 = vst.msk [vmem:[%s204 + $0x8] sm:$0x3f] %vm703, %v701
      %s705 = scalar_lea.vmem %s197, 32
      %v706 = vld [vmem:[%s705] sm:$0xff]
      %v707 = vld [vmem:[%s705 + $0x8] sm:$0xff]
      %v708 = vld [vmem:[%s705 + $0x10] sm:$0xff]
      %v709 = vld [vmem:[%s705 + $0x18] sm:$0xff]
      %710 = vmatpush.msra.mxu0 0.0
      %711 = vmatpush.msra.mxu0 0.0
      %712 = vmatpush.msra.mxu0 0.0
      %713 = vmatpush.msra.mxu0 0.0
      %714 = vmatpush.msra.mxu0 0.0
      %715 = vmatpush.msra.mxu0 0.0
      %716 = vmatpush.msra.mxu0 0.0
      %717 = vmatpush.msra.mxu0 0.0
      %718 = vmatpush.msra.mxu0 0.0
      %719 = vmatpush.msra.mxu0 0.0
      %720 = vmatpush.msra.mxu0 0.0
      %721 = vmatpush.msra.mxu0 0.0
      %v722 = vand.u32 %v709, 4294901760
      %723 = vmatpush.msra.mxu0 %v722
      %v724 = vand.u32 %v708, 4294901760
      %725 = vmatpush.msra.mxu0 %v724
      %v726 = vand.u32 %v707, 4294901760
      %727 = vmatpush.msra.mxu0 %v726
      %v728 = vand.u32 %v706, 4294901760
      %729 = vmatpush.msra.mxu0 %v728
      %v730 = vand.u32 %v217, 4294901760
      %v731 = vsub.f32 %v217, %v730
      %v732 = vand.u32 %v731, 4294901760
      %v733 = vsub.f32 %v731, %v732
      %v734 = vand.u32 %v733, 4294901760
      %735 = vmatmul.f32.gmra.mxu0 %v734
      %v736 = vpop.f32.mrf.mxu0
      %v737 = vadd.f32 0.0, %v736
      %738 = vdwg.mxu0
      %739 = vmatpush.msra.mxu0 0.0
      %740 = vmatpush.msra.mxu0 0.0
      %741 = vmatpush.msra.mxu0 0.0
      %742 = vmatpush.msra.mxu0 0.0
      %743 = vmatpush.msra.mxu0 0.0
      %744 = vmatpush.msra.mxu0 0.0
      %745 = vmatpush.msra.mxu0 0.0
      %746 = vmatpush.msra.mxu0 0.0
      %747 = vmatpush.msra.mxu0 0.0
      %748 = vmatpush.msra.mxu0 0.0
      %749 = vmatpush.msra.mxu0 0.0
      %750 = vmatpush.msra.mxu0 0.0
      %v751 = vand.u32 %v709, 4294901760
      %v752 = vsub.f32 %v709, %v751
      %v753 = vand.u32 %v752, 4294901760
      %v754 = vsub.f32 %v752, %v753
      %v755 = vand.u32 %v754, 4294901760
      %756 = vmatpush.msra.mxu0 %v755
      %v757 = vand.u32 %v708, 4294901760
      %v758 = vsub.f32 %v708, %v757
      %v759 = vand.u32 %v758, 4294901760
      %v760 = vsub.f32 %v758, %v759
      %v761 = vand.u32 %v760, 4294901760
      %762 = vmatpush.msra.mxu0 %v761
      %v763 = vand.u32 %v707, 4294901760
      %v764 = vsub.f32 %v707, %v763
      %v765 = vand.u32 %v764, 4294901760
      %v766 = vsub.f32 %v764, %v765
      %v767 = vand.u32 %v766, 4294901760
      %768 = vmatpush.msra.mxu0 %v767
      %v769 = vand.u32 %v706, 4294901760
      %v770 = vsub.f32 %v706, %v769
      %v771 = vand.u32 %v770, 4294901760
      %v772 = vsub.f32 %v770, %v771
      %v773 = vand.u32 %v772, 4294901760
      %774 = vmatpush.msra.mxu0 %v773
      %v775 = vand.u32 %v217, 4294901760
      %776 = vmatmul.f32.gmra.mxu0 %v775
      %v777 = vpop.f32.mrf.mxu0
      %v778 = vadd.f32 %v737, %v777
      %779 = vdwg.mxu0
      %780 = vmatpush.msra.mxu0 0.0
      %781 = vmatpush.msra.mxu0 0.0
      %782 = vmatpush.msra.mxu0 0.0
      %783 = vmatpush.msra.mxu0 0.0
      %784 = vmatpush.msra.mxu0 0.0
      %785 = vmatpush.msra.mxu0 0.0
      %786 = vmatpush.msra.mxu0 0.0
      %787 = vmatpush.msra.mxu0 0.0
      %788 = vmatpush.msra.mxu0 0.0
      %789 = vmatpush.msra.mxu0 0.0
      %790 = vmatpush.msra.mxu0 0.0
      %791 = vmatpush.msra.mxu0 0.0
      %v792 = vand.u32 %v709, 4294901760
      %v793 = vsub.f32 %v709, %v792
      %794 = vmatpush.msra.mxu0 %v793
      %v795 = vand.u32 %v708, 4294901760
      %v796 = vsub.f32 %v708, %v795
      %797 = vmatpush.msra.mxu0 %v796
      %v798 = vand.u32 %v707, 4294901760
      %v799 = vsub.f32 %v707, %v798
      %800 = vmatpush.msra.mxu0 %v799
      %v801 = vand.u32 %v706, 4294901760
      %v802 = vsub.f32 %v706, %v801
      %803 = vmatpush.msra.mxu0 %v802
      %v804 = vand.u32 %v217, 4294901760
      %v805 = vsub.f32 %v217, %v804
      %806 = vmatmul.f32.gmra.mxu0 %v805
      %v807 = vpop.f32.mrf.mxu0
      %v808 = vadd.f32 %v778, %v807
      %809 = vdwg.mxu0
      %810 = vmatpush.msra.mxu0 0.0
      %811 = vmatpush.msra.mxu0 0.0
      %812 = vmatpush.msra.mxu0 0.0
      %813 = vmatpush.msra.mxu0 0.0
      %814 = vmatpush.msra.mxu0 0.0
      %815 = vmatpush.msra.mxu0 0.0
      %816 = vmatpush.msra.mxu0 0.0
      %817 = vmatpush.msra.mxu0 0.0
      %818 = vmatpush.msra.mxu0 0.0
      %819 = vmatpush.msra.mxu0 0.0
      %820 = vmatpush.msra.mxu0 0.0
      %821 = vmatpush.msra.mxu0 0.0
      %v822 = vand.u32 %v709, 4294901760
      %823 = vmatpush.msra.mxu0 %v822
      %v824 = vand.u32 %v708, 4294901760
      %825 = vmatpush.msra.mxu0 %v824
      %v826 = vand.u32 %v707, 4294901760
      %827 = vmatpush.msra.mxu0 %v826
      %v828 = vand.u32 %v706, 4294901760
      %829 = vmatpush.msra.mxu0 %v828
      %v830 = vand.u32 %v217, 4294901760
      %v831 = vsub.f32 %v217, %v830
      %v832 = vand.u32 %v831, 4294901760
      %833 = vmatmul.f32.gmra.mxu0 %v832
      %v834 = vpop.f32.mrf.mxu0
      %v835 = vadd.f32 %v808, %v834
      %836 = vdwg.mxu0
      %837 = vmatpush.msra.mxu0 0.0
      %838 = vmatpush.msra.mxu0 0.0
      %839 = vmatpush.msra.mxu0 0.0
      %840 = vmatpush.msra.mxu0 0.0
      %841 = vmatpush.msra.mxu0 0.0
      %842 = vmatpush.msra.mxu0 0.0
      %843 = vmatpush.msra.mxu0 0.0
      %844 = vmatpush.msra.mxu0 0.0
      %845 = vmatpush.msra.mxu0 0.0
      %846 = vmatpush.msra.mxu0 0.0
      %847 = vmatpush.msra.mxu0 0.0
      %848 = vmatpush.msra.mxu0 0.0
      %v849 = vand.u32 %v709, 4294901760
      %v850 = vsub.f32 %v709, %v849
      %v851 = vand.u32 %v850, 4294901760
      %852 = vmatpush.msra.mxu0 %v851
      %v853 = vand.u32 %v708, 4294901760
      %v854 = vsub.f32 %v708, %v853
      %v855 = vand.u32 %v854, 4294901760
      %856 = vmatpush.msra.mxu0 %v855
      %v857 = vand.u32 %v707, 4294901760
      %v858 = vsub.f32 %v707, %v857
      %v859 = vand.u32 %v858, 4294901760
      %860 = vmatpush.msra.mxu0 %v859
      %v861 = vand.u32 %v706, 4294901760
      %v862 = vsub.f32 %v706, %v861
      %v863 = vand.u32 %v862, 4294901760
      %864 = vmatpush.msra.mxu0 %v863
      %v865 = vand.u32 %v217, 4294901760
      %866 = vmatmul.f32.gmra.mxu0 %v865
      %v867 = vpop.f32.mrf.mxu0
      %v868 = vadd.f32 %v835, %v867
      %869 = vdwg.mxu0
      %870 = vmatpush.msra.mxu0 0.0
      %871 = vmatpush.msra.mxu0 0.0
      %872 = vmatpush.msra.mxu0 0.0
      %873 = vmatpush.msra.mxu0 0.0
      %874 = vmatpush.msra.mxu0 0.0
      %875 = vmatpush.msra.mxu0 0.0
      %876 = vmatpush.msra.mxu0 0.0
      %877 = vmatpush.msra.mxu0 0.0
      %878 = vmatpush.msra.mxu0 0.0
      %879 = vmatpush.msra.mxu0 0.0
      %880 = vmatpush.msra.mxu0 0.0
      %881 = vmatpush.msra.mxu0 0.0
      %v882 = vand.u32 %v709, 4294901760
      %883 = vmatpush.msra.mxu0 %v882
      %v884 = vand.u32 %v708, 4294901760
      %885 = vmatpush.msra.mxu0 %v884
      %v886 = vand.u32 %v707, 4294901760
      %887 = vmatpush.msra.mxu0 %v886
      %v888 = vand.u32 %v706, 4294901760
      %889 = vmatpush.msra.mxu0 %v888
      %v890 = vand.u32 %v217, 4294901760
      %891 = vmatmul.f32.gmra.mxu0 %v890
      %v892 = vpop.f32.mrf.mxu0
      %v893 = vadd.f32 %v868, %v892
      %894 = vdwg.mxu0
      %v896 = vsel %vm404, %v893, 0
      %898 = vmatpush.msra.mxu0 0.0
      %899 = vmatpush.msra.mxu0 0.0
      %900 = vmatpush.msra.mxu0 0.0
      %901 = vmatpush.msra.mxu0 0.0
      %902 = vmatpush.msra.mxu0 0.0
      %903 = vmatpush.msra.mxu0 0.0
      %904 = vmatpush.msra.mxu0 0.0
      %905 = vmatpush.msra.mxu0 0.0
      %906 = vmatpush.msra.mxu0 0.0
      %907 = vmatpush.msra.mxu0 0.0
      %908 = vmatpush.msra.mxu0 0.0
      %909 = vmatpush.msra.mxu0 0.0
      %910 = vmatpush.msra.mxu0 0.0
      %911 = vmatpush.msra.mxu0 0.0
      %912 = vmatpush.msra.mxu0 0.0
      %v913 = vand.u32 %v207, 4294901760
      %914 = vmatpush.msra.mxu0 %v913
      %v915 = vand.u32 %v896, 4294901760
      %v916 = vsub.f32 %v896, %v915
      %v917 = vand.u32 %v916, 4294901760
      %v918 = vsub.f32 %v916, %v917
      %v919 = vand.u32 %v918, 4294901760
      %920 = vmatmul.f32.gmra.mxu0 %v919
      %v921 = vpop.f32.mrf.mxu0
      %v922 = vadd.f32 %v209, %v921
      %923 = vdwg.mxu0
      %924 = vmatpush.msra.mxu0 0.0
      %925 = vmatpush.msra.mxu0 0.0
      %926 = vmatpush.msra.mxu0 0.0
      %927 = vmatpush.msra.mxu0 0.0
      %928 = vmatpush.msra.mxu0 0.0
      %929 = vmatpush.msra.mxu0 0.0
      %930 = vmatpush.msra.mxu0 0.0
      %931 = vmatpush.msra.mxu0 0.0
      %932 = vmatpush.msra.mxu0 0.0
      %933 = vmatpush.msra.mxu0 0.0
      %934 = vmatpush.msra.mxu0 0.0
      %935 = vmatpush.msra.mxu0 0.0
      %936 = vmatpush.msra.mxu0 0.0
      %937 = vmatpush.msra.mxu0 0.0
      %938 = vmatpush.msra.mxu0 0.0
      %v939 = vand.u32 %v207, 4294901760
      %v940 = vsub.f32 %v207, %v939
      %v941 = vand.u32 %v940, 4294901760
      %v942 = vsub.f32 %v940, %v941
      %v943 = vand.u32 %v942, 4294901760
      %944 = vmatpush.msra.mxu0 %v943
      %v945 = vand.u32 %v896, 4294901760
      %946 = vmatmul.f32.gmra.mxu0 %v945
      %v947 = vpop.f32.mrf.mxu0
      %v948 = vadd.f32 %v922, %v947
      %949 = vdwg.mxu0
      %950 = vmatpush.msra.mxu0 0.0
      %951 = vmatpush.msra.mxu0 0.0
      %952 = vmatpush.msra.mxu0 0.0
      %953 = vmatpush.msra.mxu0 0.0
      %954 = vmatpush.msra.mxu0 0.0
      %955 = vmatpush.msra.mxu0 0.0
      %956 = vmatpush.msra.mxu0 0.0
      %957 = vmatpush.msra.mxu0 0.0
      %958 = vmatpush.msra.mxu0 0.0
      %959 = vmatpush.msra.mxu0 0.0
      %960 = vmatpush.msra.mxu0 0.0
      %961 = vmatpush.msra.mxu0 0.0
      %962 = vmatpush.msra.mxu0 0.0
      %963 = vmatpush.msra.mxu0 0.0
      %964 = vmatpush.msra.mxu0 0.0
      %v965 = vand.u32 %v207, 4294901760
      %v966 = vsub.f32 %v207, %v965
      %967 = vmatpush.msra.mxu0 %v966
      %v968 = vand.u32 %v896, 4294901760
      %v969 = vsub.f32 %v896, %v968
      %970 = vmatmul.f32.gmra.mxu0 %v969
      %v971 = vpop.f32.mrf.mxu0
      %v972 = vadd.f32 %v948, %v971
      %973 = vdwg.mxu0
      %974 = vmatpush.msra.mxu0 0.0
      %975 = vmatpush.msra.mxu0 0.0
      %976 = vmatpush.msra.mxu0 0.0
      %977 = vmatpush.msra.mxu0 0.0
      %978 = vmatpush.msra.mxu0 0.0
      %979 = vmatpush.msra.mxu0 0.0
      %980 = vmatpush.msra.mxu0 0.0
      %981 = vmatpush.msra.mxu0 0.0
      %982 = vmatpush.msra.mxu0 0.0
      %983 = vmatpush.msra.mxu0 0.0
      %984 = vmatpush.msra.mxu0 0.0
      %985 = vmatpush.msra.mxu0 0.0
      %986 = vmatpush.msra.mxu0 0.0
      %987 = vmatpush.msra.mxu0 0.0
      %988 = vmatpush.msra.mxu0 0.0
      %v989 = vand.u32 %v207, 4294901760
      %990 = vmatpush.msra.mxu0 %v989
      %v991 = vand.u32 %v896, 4294901760
      %v992 = vsub.f32 %v896, %v991
      %v993 = vand.u32 %v992, 4294901760
      %994 = vmatmul.f32.gmra.mxu0 %v993
      %v995 = vpop.f32.mrf.mxu0
      %v996 = vadd.f32 %v972, %v995
      %997 = vdwg.mxu0
      %998 = vmatpush.msra.mxu0 0.0
      %999 = vmatpush.msra.mxu0 0.0
      %1000 = vmatpush.msra.mxu0 0.0
      %1001 = vmatpush.msra.mxu0 0.0
      %1002 = vmatpush.msra.mxu0 0.0
      %1003 = vmatpush.msra.mxu0 0.0
      %1004 = vmatpush.msra.mxu0 0.0
      %1005 = vmatpush.msra.mxu0 0.0
      %1006 = vmatpush.msra.mxu0 0.0
      %1007 = vmatpush.msra.mxu0 0.0
      %1008 = vmatpush.msra.mxu0 0.0
      %1009 = vmatpush.msra.mxu0 0.0
      %1010 = vmatpush.msra.mxu0 0.0
      %1011 = vmatpush.msra.mxu0 0.0
      %1012 = vmatpush.msra.mxu0 0.0
      %v1013 = vand.u32 %v207, 4294901760
      %v1014 = vsub.f32 %v207, %v1013
      %v1015 = vand.u32 %v1014, 4294901760
      %1016 = vmatpush.msra.mxu0 %v1015
      %v1017 = vand.u32 %v896, 4294901760
      %1018 = vmatmul.f32.gmra.mxu0 %v1017
      %v1019 = vpop.f32.mrf.mxu0
      %v1020 = vadd.f32 %v996, %v1019
      %1021 = vdwg.mxu0
      %1022 = vmatpush.msra.mxu0 0.0
      %1023 = vmatpush.msra.mxu0 0.0
      %1024 = vmatpush.msra.mxu0 0.0
      %1025 = vmatpush.msra.mxu0 0.0
      %1026 = vmatpush.msra.mxu0 0.0
      %1027 = vmatpush.msra.mxu0 0.0
      %1028 = vmatpush.msra.mxu0 0.0
      %1029 = vmatpush.msra.mxu0 0.0
      %1030 = vmatpush.msra.mxu0 0.0
      %1031 = vmatpush.msra.mxu0 0.0
      %1032 = vmatpush.msra.mxu0 0.0
      %1033 = vmatpush.msra.mxu0 0.0
      %1034 = vmatpush.msra.mxu0 0.0
      %1035 = vmatpush.msra.mxu0 0.0
      %1036 = vmatpush.msra.mxu0 0.0
      %v1037 = vand.u32 %v207, 4294901760
      %1038 = vmatpush.msra.mxu0 %v1037
      %v1039 = vand.u32 %v896, 4294901760
      %1040 = vmatmul.f32.gmra.mxu0 %v1039
      %v1041 = vpop.f32.mrf.mxu0
      %v1042 = vadd.f32 %v1020, %v1041
      %1043 = vdwg.mxu0
      %1044 = vmatpush.msra.mxu0 0.0
      %1045 = vmatpush.msra.mxu0 0.0
      %1046 = vmatpush.msra.mxu0 0.0
      %1047 = vmatpush.msra.mxu0 0.0
      %1048 = vmatpush.msra.mxu0 0.0
      %1049 = vmatpush.msra.mxu0 0.0
      %1050 = vmatpush.msra.mxu0 0.0
      %1051 = vmatpush.msra.mxu0 0.0
      %1052 = vmatpush.msra.mxu0 0.0
      %1053 = vmatpush.msra.mxu0 0.0
      %1054 = vmatpush.msra.mxu0 0.0
      %1055 = vmatpush.msra.mxu0 0.0
      %1056 = vmatpush.msra.mxu0 0.0
      %1057 = vmatpush.msra.mxu0 0.0
      %1058 = vmatpush.msra.mxu0 0.0
      %v1059 = vand.u32 %v208, 4294901760
      %1060 = vmatpush.msra.mxu0 %v1059
      %v1061 = vand.u32 %v896, 4294901760
      %v1062 = vsub.f32 %v896, %v1061
      %v1063 = vand.u32 %v1062, 4294901760
      %v1064 = vsub.f32 %v1062, %v1063
      %v1065 = vand.u32 %v1064, 4294901760
      %1066 = vmatmul.f32.gmra.mxu0 %v1065
      %v1067 = vpop.f32.mrf.mxu0
      %v1068 = vadd.f32 %v210, %v1067
      %1069 = vdwg.mxu0
      %1070 = vmatpush.msra.mxu0 0.0
      %1071 = vmatpush.msra.mxu0 0.0
      %1072 = vmatpush.msra.mxu0 0.0
      %1073 = vmatpush.msra.mxu0 0.0
      %1074 = vmatpush.msra.mxu0 0.0
      %1075 = vmatpush.msra.mxu0 0.0
      %1076 = vmatpush.msra.mxu0 0.0
      %1077 = vmatpush.msra.mxu0 0.0
      %1078 = vmatpush.msra.mxu0 0.0
      %1079 = vmatpush.msra.mxu0 0.0
      %1080 = vmatpush.msra.mxu0 0.0
      %1081 = vmatpush.msra.mxu0 0.0
      %1082 = vmatpush.msra.mxu0 0.0
      %1083 = vmatpush.msra.mxu0 0.0
      %1084 = vmatpush.msra.mxu0 0.0
      %v1085 = vand.u32 %v208, 4294901760
      %v1086 = vsub.f32 %v208, %v1085
      %v1087 = vand.u32 %v1086, 4294901760
      %v1088 = vsub.f32 %v1086, %v1087
      %v1089 = vand.u32 %v1088, 4294901760
      %1090 = vmatpush.msra.mxu0 %v1089
      %v1091 = vand.u32 %v896, 4294901760
      %1092 = vmatmul.f32.gmra.mxu0 %v1091
      %v1093 = vpop.f32.mrf.mxu0
      %v1094 = vadd.f32 %v1068, %v1093
      %1095 = vdwg.mxu0
      %1096 = vmatpush.msra.mxu0 0.0
      %1097 = vmatpush.msra.mxu0 0.0
      %1098 = vmatpush.msra.mxu0 0.0
      %1099 = vmatpush.msra.mxu0 0.0
      %1100 = vmatpush.msra.mxu0 0.0
      %1101 = vmatpush.msra.mxu0 0.0
      %1102 = vmatpush.msra.mxu0 0.0
      %1103 = vmatpush.msra.mxu0 0.0
      %1104 = vmatpush.msra.mxu0 0.0
      %1105 = vmatpush.msra.mxu0 0.0
      %1106 = vmatpush.msra.mxu0 0.0
      %1107 = vmatpush.msra.mxu0 0.0
      %1108 = vmatpush.msra.mxu0 0.0
      %1109 = vmatpush.msra.mxu0 0.0
      %1110 = vmatpush.msra.mxu0 0.0
      %v1111 = vand.u32 %v208, 4294901760
      %v1112 = vsub.f32 %v208, %v1111
      %1113 = vmatpush.msra.mxu0 %v1112
      %v1114 = vand.u32 %v896, 4294901760
      %v1115 = vsub.f32 %v896, %v1114
      %1116 = vmatmul.f32.gmra.mxu0 %v1115
      %v1117 = vpop.f32.mrf.mxu0
      %v1118 = vadd.f32 %v1094, %v1117
      %1119 = vdwg.mxu0
      %1120 = vmatpush.msra.mxu0 0.0
      %1121 = vmatpush.msra.mxu0 0.0
      %1122 = vmatpush.msra.mxu0 0.0
      %1123 = vmatpush.msra.mxu0 0.0
      %1124 = vmatpush.msra.mxu0 0.0
      %1125 = vmatpush.msra.mxu0 0.0
      %1126 = vmatpush.msra.mxu0 0.0
      %1127 = vmatpush.msra.mxu0 0.0
      %1128 = vmatpush.msra.mxu0 0.0
      %1129 = vmatpush.msra.mxu0 0.0
      %1130 = vmatpush.msra.mxu0 0.0
      %1131 = vmatpush.msra.mxu0 0.0
      %1132 = vmatpush.msra.mxu0 0.0
      %1133 = vmatpush.msra.mxu0 0.0
      %1134 = vmatpush.msra.mxu0 0.0
      %v1135 = vand.u32 %v208, 4294901760
      %1136 = vmatpush.msra.mxu0 %v1135
      %v1137 = vand.u32 %v896, 4294901760
      %v1138 = vsub.f32 %v896, %v1137
      %v1139 = vand.u32 %v1138, 4294901760
      %1140 = vmatmul.f32.gmra.mxu0 %v1139
      %v1141 = vpop.f32.mrf.mxu0
      %v1142 = vadd.f32 %v1118, %v1141
      %1143 = vdwg.mxu0
      %1144 = vmatpush.msra.mxu0 0.0
      %1145 = vmatpush.msra.mxu0 0.0
      %1146 = vmatpush.msra.mxu0 0.0
      %1147 = vmatpush.msra.mxu0 0.0
      %1148 = vmatpush.msra.mxu0 0.0
      %1149 = vmatpush.msra.mxu0 0.0
      %1150 = vmatpush.msra.mxu0 0.0
      %1151 = vmatpush.msra.mxu0 0.0
      %1152 = vmatpush.msra.mxu0 0.0
      %1153 = vmatpush.msra.mxu0 0.0
      %1154 = vmatpush.msra.mxu0 0.0
      %1155 = vmatpush.msra.mxu0 0.0
      %1156 = vmatpush.msra.mxu0 0.0
      %1157 = vmatpush.msra.mxu0 0.0
      %1158 = vmatpush.msra.mxu0 0.0
      %v1159 = vand.u32 %v208, 4294901760
      %v1160 = vsub.f32 %v208, %v1159
      %v1161 = vand.u32 %v1160, 4294901760
      %1162 = vmatpush.msra.mxu0 %v1161
      %v1163 = vand.u32 %v896, 4294901760
      %1164 = vmatmul.f32.gmra.mxu0 %v1163
      %v1165 = vpop.f32.mrf.mxu0
      %v1166 = vadd.f32 %v1142, %v1165
      %1167 = vdwg.mxu0
      %1168 = vmatpush.msra.mxu0 0.0
      %1169 = vmatpush.msra.mxu0 0.0
      %1170 = vmatpush.msra.mxu0 0.0
      %1171 = vmatpush.msra.mxu0 0.0
      %1172 = vmatpush.msra.mxu0 0.0
      %1173 = vmatpush.msra.mxu0 0.0
      %1174 = vmatpush.msra.mxu0 0.0
      %1175 = vmatpush.msra.mxu0 0.0
      %1176 = vmatpush.msra.mxu0 0.0
      %1177 = vmatpush.msra.mxu0 0.0
      %1178 = vmatpush.msra.mxu0 0.0
      %1179 = vmatpush.msra.mxu0 0.0
      %1180 = vmatpush.msra.mxu0 0.0
      %1181 = vmatpush.msra.mxu0 0.0
      %1182 = vmatpush.msra.mxu0 0.0
      %v1183 = vand.u32 %v208, 4294901760
      %1184 = vmatpush.msra.mxu0 %v1183
      %v1185 = vand.u32 %v896, 4294901760
      %1186 = vmatmul.f32.gmra.mxu0 %v1185
      %v1187 = vpop.f32.mrf.mxu0
      %v1188 = vadd.f32 %v1166, %v1187
      %1189 = vdwg.mxu0
      %v1190 = vtanh.pop %v1042
      %v1191 = vtanh.pop %v1188
      %s1192 = scalar_lea.vmem %s204, 16
      %1193 = vst [vmem:[%s1192] sm:$0x3f] %v1190
      %1194 = vst.msk [vmem:[%s1192 + $0x8] sm:$0x3f] %vm703, %v1191
      %s1195 = smul.u32 2, %s15
      %p1196 = scmp.lt.s32.totalorder %s1195, 3
      %s1197 = scalar_select %p1196, %s1195, 3
      %s1198 = smul.addr %s1197, 2
      %s1199 = smul.addr %s1198, 8
      %s1200 = scalar_lea.vmem %s4, %s1199
      // Predicated region
      $region37: #{wrench_decoder_forward.1} parent=35 // pred_check
        %p1201 = pneg %p122
      $region38: #{wrench_decoder_forward.1} parent=35 // pred_check_branch
        %1203 = sbr.rel (%p1201) target = $region40
      $region39: #{wrench_decoder_forward.1} parent=35 // pred_region
        %s1204 = smul.u32 2, %s15
      $region40: #{wrench_decoder_forward.1} parent=35 // pred_fallthru
        _
    $region36: #{wrench_decoder_forward.1} parent=5 // pred_fallthru
      _
    %p1205 = scmp.le.s32.totalorder 2, %s10
    // Predicated region
    $region41: #{wrench_decoder_forward.1} parent=5 // pred_check
      %p1206 = pneg %p1205
    $region42: #{wrench_decoder_forward.1} parent=5 // pred_check_branch
      %1208 = sbr.rel (%p1206) target = $region44
    $region43: #{wrench_decoder_forward.1} parent=5 // pred_region
      %s1209 = ssub.s32 %s10, 2
      // Predicated region
      $region45: #{wrench_decoder_forward.1} parent=43 // pred_check
        %p1210 = pneg %p128
      $region46: #{wrench_decoder_forward.1} parent=43 // pred_check_branch
        %1212 = sbr.rel (%p1210) target = $region48
      $region47: #{wrench_decoder_forward.1} parent=43 // pred_region
        %s1213 = smul.u32 2, %s16
        %p1214 = scmp.lt.s32.totalorder %s1213, 3
        %s1215 = scalar_select %p1214, %s1213, 3
        %s1216 = smul.addr %s1215, 2
        %s1217 = smul.addr %s1216, 8
        %s1218 = scalar_lea.vmem %s4, %s1217
      $region48: #{wrench_decoder_forward.1} parent=43 // pred_fallthru
        _
    $region44: #{wrench_decoder_forward.1} parent=5 // pred_fallthru
      _
  $region6: #{wrench_decoder_forward.1} parent=0 // loop_footer
    %s14 = sadd.s32 1, %s10
  $region7: #{wrench_decoder_forward.1} parent=0 // loop_footer_branch
    %9 = sbr.rel target = $region3
  $region8: #{wrench_decoder_forward.1} parent=0 // loop_exit
    _

</llo_original>
